<compile_context>
chip_gen: v7x
topology: tpu7x:2x2x1
jax: 0.10.0
libtpu: 0.0.40
codegen_flags: <defaults>
</compile_context>

<pallas_src>
import functools

import jax
import jax.numpy as jnp
from jax.experimental import pallas as pl
from jax.experimental.pallas import tpu as pltpu

_MIB = 1024 * 1024


def _round_up(x, m):
    return (x + m - 1) // m * m


def _vmem_budgets():
    """Per-generation (tiling budget, vmem_limit_bytes, prefer_two_row_tiles)."""
    try:
        cap = pltpu.get_tpu_info().vmem_capacity_bytes
    except Exception:  # unknown chip / interpret mode
        cap = None
    if cap is not None and cap >= 96 * _MIB:
        # v5e / v6e: 128 MiB physical VMEM, single TensorCore per chip.
        return 84 * _MIB, 100 * _MIB, False
    # v7x (64 MiB physical, 2 TensorCores) or unknown: keep headroom for
    # compiler scratch / semaphores and prefer >=2 row tiles for megacore.
    return 40 * _MIB, 50 * _MIB, True


def _ffn_kernel(x_ref, w1_ref, b1_ref, w2_ref, b2_ref, gamma_ref, beta_ref,
                o_ref, acc_ref, *, eps):
    k = pl.program_id(1)
    nk = pl.num_programs(1)

    @pl.when(k == 0)
    def _():
        acc_ref[...] = jnp.zeros_like(acc_ref)

    # linear1 + ReLU on this d_ff slice.  Native-dtype operands go straight to
    # the MXU; accumulate in f32.
    h = jnp.dot(x_ref[...], w1_ref[...], preferred_element_type=jnp.float32)
    h = jnp.maximum(h + b1_ref[...].astype(jnp.float32), 0.0)
    # TODO(synk): dropout omitted (inference / eval-mode identity).

    # Partial linear2 contribution of this d_ff slice.
    partial = jnp.dot(h.astype(w2_ref.dtype), w2_ref[...],
                      preferred_element_type=jnp.float32)

    # Non-final steps: accumulate into the f32 VMEM scratch.
    @pl.when(k < nk - 1)
    def _():
        acc_ref[...] += partial

    # Final step: feed the fresh partial straight into the epilogue (avoids
    # one (tm, d_model) f32 store + reload of the accumulator).
    @pl.when(k == nk - 1)
    def _():
        y = (acc_ref[...] + partial
             + b2_ref[...].astype(jnp.float32)
             + x_ref[...].astype(jnp.float32))
        mean = jnp.mean(y, axis=-1, keepdims=True)
        centered = y - mean
        var = jnp.mean(centered * centered, axis=-1, keepdims=True)
        out = centered * jax.lax.rsqrt(var + eps)
        out = (out * gamma_ref[...].astype(jnp.float32)
               + beta_ref[...].astype(jnp.float32))
        # TODO(synk): for d_model < 128 this is a masked vst.msk partial store;
        # a lane-dense folded output layout ((tm*d_model/128, 128)) would speed
        # up the epilogue writeback but needs an in-kernel relayout.
        o_ref[...] = out.astype(o_ref.dtype)


def _choose_tiles(M, d_model, d_ff, x_item, w_item, out_item, budget,
                  prefer_two_row_tiles):
    """Pick (tm, tf) so the working set stays under the per-chip VMEM budget."""
    d_ff_pad = _round_up(d_ff, 128)

    def vmem_bytes(tm, tf):
        # Double-buffered pipeline inputs/outputs, each at its real itemsize.
        weights = 2 * (d_model * tf + tf * d_model) * w_item       # W1 + W2 slices
        small = 2 * (tf + 3 * d_model) * w_item                    # b1, b2, gamma, beta
        x_io = 2 * tm * d_model * x_item                           # x tile
        out_io = 2 * tm * d_model * out_item                       # out tile
        acc = tm * d_model * 4                                     # f32 accumulator
        h = tm * tf * 4                                            # f32 intermediate
        return weights + small + x_io + out_io + acc + h

    # Row-tile candidates, largest first (weight HBM traffic ~ (M/tm)*(|W1|+|W2|),
    # so a big tm pushes the kernel from weight-streaming-bound to MXU-bound).
    if M <= 128:
        tm_cands = [_round_up(max(M, 8), 16)]
    else:
        m16 = _round_up(M, 16)
        tm_cands = [t for t in (1024, 512, 256, 128) if t < m16]
        if not tm_cands:
            tm_cands = [128]
        if not prefer_two_row_tiles and m16 <= 1024:
            # Single TensorCore per chip: a single row tile is fine (and
            # minimizes weight re-streaming).
            tm_cands = [m16] + tm_cands

    # d_ff tile candidates, largest first; floor at 256 (full v6e/v7x MXU K).
    tf_cands = [d_ff_pad] + [t for t in (4096, 2048, 1024, 512, 256)
                             if t < d_ff_pad]
    tf_floor = min(256, d_ff_pad)
    tf_cands = [t for t in tf_cands if t >= tf_floor]

    for tm in tm_cands:
        for tf in tf_cands:
            if vmem_bytes(tm, tf) <= budget:
                return tm, tf

    # Fallback (extreme d_model in f32): smallest candidates, allow tf=128.
    tm = tm_cands[-1]
    tf = tf_cands[-1]
    while tf > 128 and vmem_bytes(tm, tf) > budget:
        tf //= 2
    return tm, tf


def feedforward_pallas(x, w1, b1, w2, b2, gamma, beta, *, eps=1e-5,
                       compute_dtype=None):
    """x: [batch, seq, d_model]; w1: (d_model, d_ff); w2: (d_ff, d_model)."""
    batch, seq, d_model = x.shape
    d_ff = w1.shape[1]
    M = batch * seq
    out_dtype = x.dtype

    # Optional mixed-precision path: cast the MXU operands to bf16 in the
    # wrapper (halves weight HBM/VMEM, hits the native MXU path) while keeping
    # the f32 accumulator and f32 LayerNorm epilogue.
    if compute_dtype is not None:
        x = x.astype(compute_dtype)
        w1 = w1.astype(compute_dtype)
        w2 = w2.astype(compute_dtype)

    budget, vmem_limit, prefer_two = _vmem_budgets()
    tm, tf = _choose_tiles(
        M, d_model, d_ff,
        x_item=jnp.dtype(x.dtype).itemsize,
        w_item=jnp.dtype(w1.dtype).itemsize,
        out_item=jnp.dtype(out_dtype).itemsize,
        budget=budget,
        prefer_two_row_tiles=prefer_two)

    M_pad = _round_up(M, tm)
    d_ff_pad = _round_up(d_ff, tf)

    x2d = x.reshape(M, d_model)
    if M_pad != M:
        x2d = jnp.pad(x2d, ((0, M_pad - M), (0, 0)))
    if d_ff_pad != d_ff:
        # Zero-padding d_ff is exact: relu(0*x + 0) = 0 contributes nothing.
        w1 = jnp.pad(w1, ((0, 0), (0, d_ff_pad - d_ff)))
        b1 = jnp.pad(b1, ((0, d_ff_pad - d_ff),))
        w2 = jnp.pad(w2, ((0, d_ff_pad - d_ff), (0, 0)))

    b1_2d = b1.reshape(1, d_ff_pad)
    b2_2d = b2.reshape(1, d_model)
    gamma_2d = gamma.reshape(1, d_model)
    beta_2d = beta.reshape(1, d_model)

    grid = (M_pad // tm, d_ff_pad // tf)
    kernel = functools.partial(_ffn_kernel, eps=eps)

    out2d = pl.pallas_call(
        kernel,
        out_shape=jax.ShapeDtypeStruct((M_pad, d_model), out_dtype),
        grid_spec=pltpu.PrefetchScalarGridSpec(
            num_scalar_prefetch=0,
            grid=grid,
            in_specs=[
                pl.BlockSpec((tm, d_model), lambda i, k: (i, 0)),   # x tile
                pl.BlockSpec((d_model, tf), lambda i, k: (0, k)),   # W1 slice
                pl.BlockSpec((1, tf), lambda i, k: (0, k)),         # b1 slice
                pl.BlockSpec((tf, d_model), lambda i, k: (k, 0)),   # W2 slice
                pl.BlockSpec((1, d_model), lambda i, k: (0, 0)),    # b2
                pl.BlockSpec((1, d_model), lambda i, k: (0, 0)),    # gamma
                pl.BlockSpec((1, d_model), lambda i, k: (0, 0)),    # beta
            ],
            out_specs=pl.BlockSpec((tm, d_model), lambda i, k: (i, 0)),
            scratch_shapes=[pltpu.VMEM((tm, d_model), jnp.float32)],
        ),
        compiler_params=pltpu.CompilerParams(
            dimension_semantics=("parallel", "arbitrary"),
            vmem_limit_bytes=vmem_limit),
    )(x2d, w1, b1_2d, w2, b2_2d, gamma_2d, beta_2d)

    return out2d[:M].reshape(batch, seq, d_model)


def _reference(x, w1, b1, w2, b2, gamma, beta, eps=1e-5):
    h = jnp.maximum(x @ w1 + b1, 0.0)
    y = h @ w2 + b2
    y = y + x
    mean = jnp.mean(y, axis=-1, keepdims=True)
    var = jnp.mean((y - mean) ** 2, axis=-1, keepdims=True)
    return (y - mean) * jax.lax.rsqrt(var + eps) * gamma + beta


def _make_params(key, d_model, d_ff):
    kw1, kb1, kw2, kb2 = jax.random.split(key, 4)
    lim1 = 1.0 / jnp.sqrt(d_model)
    lim2 = 1.0 / jnp.sqrt(d_ff)
    # stored pre-transposed: (in, out)
    w1 = jax.random.uniform(kw1, (d_model, d_ff), minval=-lim1, maxval=lim1,
                            dtype=jnp.float32)
    b1 = jax.random.uniform(kb1, (d_ff,), minval=-lim1, maxval=lim1,
                            dtype=jnp.float32)
    w2 = jax.random.uniform(kw2, (d_ff, d_model), minval=-lim2, maxval=lim2,
                            dtype=jnp.float32)
    b2 = jax.random.uniform(kb2, (d_model,), minval=-lim2, maxval=lim2,
                            dtype=jnp.float32)
    gamma = jnp.ones((d_model,), dtype=jnp.float32)   # LayerNorm weight
    beta = jnp.zeros((d_model,), dtype=jnp.float32)   # LayerNorm bias
    return w1, b1, w2, b2, gamma, beta


if __name__ == "__main__":
    key = jax.random.PRNGKey(0)

    # Primary test: batch=2, seq=8, d_model=32, d_ff=64.
    batch, seq, d_model, d_ff = 2, 8, 32, 64
    kx, kp = jax.random.split(key)
    x = jax.random.normal(kx, (batch, seq, d_model), dtype=jnp.float32)
    w1, b1, w2, b2, gamma, beta = _make_params(kp, d_model, d_ff)

    out = feedforward_pallas(x, w1, b1, w2, b2, gamma, beta)
    out = jax.block_until_ready(out)
    ref = _reference(x, w1, b1, w2, b2, gamma, beta)
    assert out.shape == (batch, seq, d_model)
    assert jnp.allclose(out, ref, atol=1e-5, rtol=1e-5), "mismatch vs reference"

    # Second test: exercises the row- and d_ff-padding paths
    # (batch*seq not a multiple of the row tile; d_ff not a multiple of 128).
    batch2, seq2, d_model2, d_ff2 = 3, 7, 32, 160
    kx2, kp2 = jax.random.split(jax.random.PRNGKey(1))
    x2 = jax.random.normal(kx2, (batch2, seq2, d_model2), dtype=jnp.float32)
    p2 = _make_params(kp2, d_model2, d_ff2)
    out2 = jax.block_until_ready(feedforward_pallas(x2, *p2))
    ref2 = _reference(x2, *p2)
    assert out2.shape == (batch2, seq2, d_model2)
    assert jnp.allclose(out2, ref2, atol=1e-5, rtol=1e-5), "mismatch vs reference (padded)"

    print("KERNEL_OK")
</pallas_src>

<mosaic_0001>
module attributes {stable_mosaic.version = 11 : i64} {
  func.func @_ffn_kernel(%arg0: i32, %arg1: i32, %arg2: memref<16x32xf32, #tpu.memory_space<vmem>>, %arg3: memref<32x128xf32, #tpu.memory_space<vmem>>, %arg4: memref<1x128xf32, #tpu.memory_space<vmem>>, %arg5: memref<128x32xf32, #tpu.memory_space<vmem>>, %arg6: memref<1x32xf32, #tpu.memory_space<vmem>>, %arg7: memref<1x32xf32, #tpu.memory_space<vmem>>, %arg8: memref<1x32xf32, #tpu.memory_space<vmem>>, %arg9: memref<16x32xf32, #tpu.memory_space<vmem>>, %arg10: memref<16x32xf32, #tpu.memory_space<vmem>>) attributes {dimension_semantics = [#tpu.dimension_semantics<parallel>, #tpu.dimension_semantics<arbitrary>], iteration_bounds = array<i64: 1, 1>, scalar_prefetch = 0 : i64, scratch_operands = 1 : i64, tpu.core_type = #tpu.core_type<tc>, window_params = [{transform_indices = @transform_0, window_bounds = array<i64: 16, 32>}, {transform_indices = @transform_1, window_bounds = array<i64: 32, 128>}, {transform_indices = @transform_2, window_bounds = array<i64: 1, 128>}, {transform_indices = @transform_3, window_bounds = array<i64: 128, 32>}, {pipeline_mode = #tpu.pipeline_mode<synchronous>, transform_indices = @transform_4, window_bounds = array<i64: 1, 32>}, {pipeline_mode = #tpu.pipeline_mode<synchronous>, transform_indices = @transform_5, window_bounds = array<i64: 1, 32>}, {pipeline_mode = #tpu.pipeline_mode<synchronous>, transform_indices = @transform_6, window_bounds = array<i64: 1, 32>}, {transform_indices = @transform_7, window_bounds = array<i64: 16, 32>}]} {
    %c0_i32 = arith.constant 0 : i32
    %0 = arith.cmpi eq, %arg1, %c0_i32 : i32
    %1 = arith.extui %0 : i1 to i32
    %c0_i32_0 = arith.constant 0 : i32
    %2 = arith.cmpi ne, %1, %c0_i32_0 : i32
    scf.if %2 {
      %cst_14 = arith.constant 0.000000e+00 : f32
      %19 = vector.broadcast %cst_14 : f32 to vector<16x32xf32>
      %c0_15 = arith.constant 0 : index
      %c0_16 = arith.constant 0 : index
      %20 = vector.load %arg10[%c0_15, %c0_16] : memref<16x32xf32, #tpu.memory_space<vmem>>, vector<16x32xf32>
      tpu.vector_store %arg10[%c0_15, %c0_16], %19 {strides = array<i32>} : memref<16x32xf32, #tpu.memory_space<vmem>>, vector<16x32xf32>,
    } else {
    }
    %c0 = arith.constant 0 : index
    %c0_1 = arith.constant 0 : index
    %3 = vector.load %arg2[%c0, %c0_1] : memref<16x32xf32, #tpu.memory_space<vmem>>, vector<16x32xf32>
    %c0_2 = arith.constant 0 : index
    %c0_3 = arith.constant 0 : index
    %4 = vector.load %arg3[%c0_2, %c0_3] : memref<32x128xf32, #tpu.memory_space<vmem>>, vector<32x128xf32>
    %cst = arith.constant dense<0.000000e+00> : vector<16x128xf32>
    %5 = tpu.matmul %3, %4, %cst {dimension_numbers = #tpu.dot_dimension_numbers<[1], [0], [0], [1], [0, 0, 1, 1], [], []>} : vector<16x32xf32>, vector<32x128xf32>, vector<16x128xf32> -> vector<16x128xf32>
    %c0_4 = arith.constant 0 : index
    %c0_5 = arith.constant 0 : index
    %6 = vector.load %arg4[%c0_4, %c0_5] : memref<1x128xf32, #tpu.memory_space<vmem>>, vector<1x128xf32>
    %7 = vector.broadcast %6 : vector<1x128xf32> to vector<16x128xf32>
    %8 = arith.addf %5, %7 : vector<16x128xf32>
    %cst_6 = arith.constant 0.000000e+00 : f32
    %9 = vector.broadcast %cst_6 : f32 to vector<16x128xf32>
    %10 = arith.maximumf %8, %9 : vector<16x128xf32>
    %c0_7 = arith.constant 0 : index
    %c0_8 = arith.constant 0 : index
    %11 = vector.load %arg5[%c0_7, %c0_8] : memref<128x32xf32, #tpu.memory_space<vmem>>, vector<128x32xf32>
    %cst_9 = arith.constant dense<0.000000e+00> : vector<16x32xf32>
    %12 = tpu.matmul %10, %11, %cst_9 {dimension_numbers = #tpu.dot_dimension_numbers<[1], [0], [0], [1], [0, 0, 1, 1], [], []>} : vector<16x128xf32>, vector<128x32xf32>, vector<16x32xf32> -> vector<16x32xf32>
    %c0_i32_10 = arith.constant 0 : i32
    %13 = arith.cmpi slt, %arg1, %c0_i32_10 : i32
    %14 = arith.extui %13 : i1 to i32
    %c0_i32_11 = arith.constant 0 : i32
    %15 = arith.cmpi ne, %14, %c0_i32_11 : i32
    scf.if %15 {
      %c0_14 = arith.constant 0 : index
      %c0_15 = arith.constant 0 : index
      %19 = vector.load %arg10[%c0_14, %c0_15] : memref<16x32xf32, #tpu.memory_space<vmem>>, vector<16x32xf32>
      %20 = arith.addf %19, %12 : vector<16x32xf32>
      %c0_16 = arith.constant 0 : index
      %c0_17 = arith.constant 0 : index
      %21 = vector.load %arg10[%c0_16, %c0_17] : memref<16x32xf32, #tpu.memory_space<vmem>>, vector<16x32xf32>
      tpu.vector_store %arg10[%c0_16, %c0_17], %20 {strides = array<i32>} : memref<16x32xf32, #tpu.memory_space<vmem>>, vector<16x32xf32>,
    } else {
    }
    %c0_i32_12 = arith.constant 0 : i32
    %16 = arith.cmpi eq, %arg1, %c0_i32_12 : i32
    %17 = arith.extui %16 : i1 to i32
    %c0_i32_13 = arith.constant 0 : i32
    %18 = arith.cmpi ne, %17, %c0_i32_13 : i32
    scf.if %18 {
      %c0_14 = arith.constant 0 : index
      %c0_15 = arith.constant 0 : index
      %19 = vector.load %arg10[%c0_14, %c0_15] : memref<16x32xf32, #tpu.memory_space<vmem>>, vector<16x32xf32>
      %20 = arith.addf %19, %12 : vector<16x32xf32>
      %c0_16 = arith.constant 0 : index
      %c0_17 = arith.constant 0 : index
      %21 = vector.load %arg6[%c0_16, %c0_17] : memref<1x32xf32, #tpu.memory_space<vmem>>, vector<1x32xf32>
      %22 = vector.broadcast %21 : vector<1x32xf32> to vector<16x32xf32>
      %23 = arith.addf %20, %22 : vector<16x32xf32>
      %c0_18 = arith.constant 0 : index
      %c0_19 = arith.constant 0 : index
      %24 = vector.load %arg2[%c0_18, %c0_19] : memref<16x32xf32, #tpu.memory_space<vmem>>, vector<16x32xf32>
      %25 = arith.addf %23, %24 : vector<16x32xf32>
      %cst_20 = arith.constant dense<0.000000e+00> : vector<16xf32>
      %26 = vector.multi_reduction <add>, %25, %cst_20 [1] : vector<16x32xf32> to vector<16xf32>
      %27 = vector.shape_cast %26 : vector<16xf32> to vector<16x1xf32>
      %cst_21 = arith.constant 3.200000e+01 : f32
      %28 = vector.broadcast %cst_21 : f32 to vector<16x1xf32>
      %29 = arith.divf %27, %28 : vector<16x1xf32>
      %30 = vector.broadcast %29 : vector<16x1xf32> to vector<16x32xf32>
      %31 = arith.subf %25, %30 : vector<16x32xf32>
      %32 = arith.mulf %31, %31 : vector<16x32xf32>
      %cst_22 = arith.constant dense<0.000000e+00> : vector<16xf32>
      %33 = vector.multi_reduction <add>, %32, %cst_22 [1] : vector<16x32xf32> to vector<16xf32>
      %34 = vector.shape_cast %33 : vector<16xf32> to vector<16x1xf32>
      %cst_23 = arith.constant 3.200000e+01 : f32
      %35 = vector.broadcast %cst_23 : f32 to vector<16x1xf32>
      %36 = arith.divf %34, %35 : vector<16x1xf32>
      %cst_24 = arith.constant 9.99999974E-6 : f32
      %37 = vector.broadcast %cst_24 : f32 to vector<16x1xf32>
      %38 = arith.addf %36, %37 : vector<16x1xf32>
      %39 = math.rsqrt %38 : vector<16x1xf32>
      %40 = vector.broadcast %39 : vector<16x1xf32> to vector<16x32xf32>
      %41 = arith.mulf %31, %40 : vector<16x32xf32>
      %c0_25 = arith.constant 0 : index
      %c0_26 = arith.constant 0 : index
      %42 = vector.load %arg7[%c0_25, %c0_26] : memref<1x32xf32, #tpu.memory_space<vmem>>, vector<1x32xf32>
      %43 = vector.broadcast %42 : vector<1x32xf32> to vector<16x32xf32>
      %44 = arith.mulf %41, %43 : vector<16x32xf32>
      %c0_27 = arith.constant 0 : index
      %c0_28 = arith.constant 0 : index
      %45 = vector.load %arg8[%c0_27, %c0_28] : memref<1x32xf32, #tpu.memory_space<vmem>>, vector<1x32xf32>
      %46 = vector.broadcast %45 : vector<1x32xf32> to vector<16x32xf32>
      %47 = arith.addf %44, %46 : vector<16x32xf32>
      %c0_29 = arith.constant 0 : index
      %c0_30 = arith.constant 0 : index
      %48 = vector.load %arg9[%c0_29, %c0_30] : memref<16x32xf32, #tpu.memory_space<vmem>>, vector<16x32xf32>
      tpu.vector_store %arg9[%c0_29, %c0_30], %47 {strides = array<i32>} : memref<16x32xf32, #tpu.memory_space<vmem>>, vector<16x32xf32>,
    } else {
    }
    return
  }
  func.func @transform_0(%arg0: i32, %arg1: i32) -> (i32, i32) {
    %c0_i32 = arith.constant 0 : i32
    %c0_i32_0 = arith.constant 0 : i32
    return %arg0, %c0_i32 : i32, i32
  }
  func.func @transform_1(%arg0: i32, %arg1: i32) -> (i32, i32) {
    %c0_i32 = arith.constant 0 : i32
    %c0_i32_0 = arith.constant 0 : i32
    return %c0_i32, %arg1 : i32, i32
  }
  func.func @transform_2(%arg0: i32, %arg1: i32) -> (i32, i32) {
    %c0_i32 = arith.constant 0 : i32
    %c0_i32_0 = arith.constant 0 : i32
    return %c0_i32, %arg1 : i32, i32
  }
  func.func @transform_3(%arg0: i32, %arg1: i32) -> (i32, i32) {
    %c0_i32 = arith.constant 0 : i32
    %c0_i32_0 = arith.constant 0 : i32
    return %arg1, %c0_i32 : i32, i32
  }
  func.func @transform_4(%arg0: i32, %arg1: i32) -> (i32, i32) {
    %c0_i32 = arith.constant 0 : i32
    %c0_i32_0 = arith.constant 0 : i32
    %c0_i32_1 = arith.constant 0 : i32
    return %c0_i32, %c0_i32_0 : i32, i32
  }
  func.func @transform_5(%arg0: i32, %arg1: i32) -> (i32, i32) {
    %c0_i32 = arith.constant 0 : i32
    %c0_i32_0 = arith.constant 0 : i32
    %c0_i32_1 = arith.constant 0 : i32
    return %c0_i32, %c0_i32_0 : i32, i32
  }
  func.func @transform_6(%arg0: i32, %arg1: i32) -> (i32, i32) {
    %c0_i32 = arith.constant 0 : i32
    %c0_i32_0 = arith.constant 0 : i32
    %c0_i32_1 = arith.constant 0 : i32
    return %c0_i32, %c0_i32_0 : i32, i32
  }
  func.func @transform_7(%arg0: i32, %arg1: i32) -> (i32, i32) {
    %c0_i32 = arith.constant 0 : i32
    %c0_i32_0 = arith.constant 0 : i32
    return %arg0, %c0_i32 : i32, i32
  }
}

</mosaic_0001>

<llo_original>
// kernel: tpu_custom_call.1
$region0: #{tpu_custom_call.1}
  #allocation0 [shape = 'u32[]', space=smem, size = 0x4, offset = 0x4, fixed_abs, tag = 'smem constant byte address 0x4 - core index']
  #allocation1 [shape = 'u32[144,128]{1,0:T(1,128)}', space=vmem, size = 0x12000, scoped, tag = 'internal scratch']
  #allocation2 [shape = 'f32[16,32]{1,0:T(8,128)}', space=vmem, size = 0x2000, scoped, tag = 'scratch operand']
  %s0 = inlined_call_operand.vmem [shape: f32[16,32], index: 0, kind: input, shape index: {}]
  %s1 = inlined_call_operand.vmem [shape: f32[32,128], index: 1, kind: input, shape index: {}]
  %s2 = inlined_call_operand.vmem [shape: f32[1,128], index: 2, kind: input, shape index: {}]
  %s3 = inlined_call_operand.vmem [shape: f32[128,32], index: 3, kind: input, shape index: {}]
  %s4 = inlined_call_operand.vmem [shape: f32[1,32], index: 4, kind: input, shape index: {}]
  %s5 = inlined_call_operand.vmem [shape: f32[1,32], index: 5, kind: input, shape index: {}]
  %s6 = inlined_call_operand.vmem [shape: f32[1,32], index: 6, kind: input, shape index: {}]
  %s7 = inlined_call_operand.hbm [shape: f32[16,32], index: 7, kind: output, shape index: {}]
  %s8 = sld [smem:[#allocation0]]
  $region50: #{tpu_custom_call.1} parent=0
    _
  %s10 = ssub.s32 1, %s8
  %s11 = scalar_select 0, %s10, %s8
  $region1: #{tpu_custom_call.1} parent=0
    #allocation3 [shape = 'u8[8192]{0}', space=vmem, size = 0x2000, scoped, tag = 'output window, operand 0, single buffered']
    #allocation4 [shape = 's32[1]{0}', space=sflag, size = 0x4, scoped, tag = 'scoped memory for tpu_custom_call.1']
    %12 = vsyncpa [#allocation4], 0
    // Predicated region
    $region2: #{tpu_custom_call.1} parent=1 // pred_check
      _
    $region3: #{tpu_custom_call.1} parent=1 // pred_check_branch
      %14 = sbr.rel (0) target = $region5
    $region4: #{tpu_custom_call.1} parent=1 // pred_region
      _
    $region5: #{tpu_custom_call.1} parent=1 // pred_fallthru
      _
    // Predicated region
    $region6: #{tpu_custom_call.1} parent=1 // pred_check
      _
    $region7: #{tpu_custom_call.1} parent=1 // pred_check_branch
      %16 = sbr.rel (0) target = $region9
    $region8: #{tpu_custom_call.1} parent=1 // pred_region
      _
    $region9: #{tpu_custom_call.1} parent=1 // pred_fallthru
      _
    // Predicated region
    $region10: #{tpu_custom_call.1} parent=1 // pred_check
      _
    $region11: #{tpu_custom_call.1} parent=1 // pred_check_branch
      %18 = sbr.rel (0) target = $region13
    $region12: #{tpu_custom_call.1} parent=1 // pred_region
      _
    $region13: #{tpu_custom_call.1} parent=1 // pred_fallthru
      _
    // Predicated region
    $region14: #{tpu_custom_call.1} parent=1 // pred_check
      _
    $region15: #{tpu_custom_call.1} parent=1 // pred_check_branch
      %20 = sbr.rel (0) target = $region17
    $region16: #{tpu_custom_call.1} parent=1 // pred_region
      _
    $region17: #{tpu_custom_call.1} parent=1 // pred_fallthru
      _
    // Predicated region
    $region18: #{tpu_custom_call.1} parent=1 // pred_check
      _
    $region19: #{tpu_custom_call.1} parent=1 // pred_check_branch
      %22 = sbr.rel (0) target = $region21
    $region20: #{tpu_custom_call.1} parent=1 // pred_region
      _
    $region21: #{tpu_custom_call.1} parent=1 // pred_fallthru
      _
    // Predicated region
    $region22: #{tpu_custom_call.1} parent=1 // pred_check
      _
    $region23: #{tpu_custom_call.1} parent=1 // pred_check_branch
      %24 = sbr.rel (0) target = $region25
    $region24: #{tpu_custom_call.1} parent=1 // pred_region
      _
    $region25: #{tpu_custom_call.1} parent=1 // pred_fallthru
      _
    // Predicated region
    $region26: #{tpu_custom_call.1} parent=1 // pred_check
      _
    $region27: #{tpu_custom_call.1} parent=1 // pred_check_branch
      %26 = sbr.rel (0) target = $region29
    $region28: #{tpu_custom_call.1} parent=1 // pred_region
      _
    $region29: #{tpu_custom_call.1} parent=1 // pred_fallthru
      _
    %p27 = scmp.eq.s32.totalorder 0, 0
    // Predicated region
    $region30: #{tpu_custom_call.1} parent=1 // pred_check
      %p28 = pneg %p27
    $region31: #{tpu_custom_call.1} parent=1 // pred_check_branch
      %30 = sbr.rel (%p28) target = $region33
    $region32: #{tpu_custom_call.1} parent=1 // pred_region
      %vm31 = vcmask 261120
      %32 = vst.msk [vmem:[#allocation2] sm:$0xff] %vm31, 0.0
      %33 = vst.msk [vmem:[#allocation2 + $0x8] sm:$0xff] %vm31, 0.0
    $region33: #{tpu_custom_call.1} parent=1 // pred_fallthru
      _
    %v34 = vld [vmem:[%s0] sm:$0xff]
    %v35 = vld [vmem:[%s0 + $0x8] sm:$0xff]
    %v36 = vld [vmem:[%s1] sm:$0xff]
    %v37 = vld [vmem:[%s1 + $0x8] sm:$0xff]
    %v38 = vld [vmem:[%s1 + $0x10] sm:$0xff]
    %v39 = vld [vmem:[%s1 + $0x18] sm:$0xff]
    %v40 = vld [vmem:[%s2] sm:$0x1]
    %v42 = vlaneseq
    %v43 = vshrl.u32 %v42, 7
    %v44 = vsub.s32 0, %v43
    %v45 = vrot.slane %v40, %v44
    %vm47 = vcmask 261120
    %v49 = vsel %vm47, %v34, 0
    %v52 = vsel %vm47, %v35, 0
    %54 = vmatprep.subr.mxu0 0.0
    %55 = vmatpush1.msra.mxu0 %v36
    %56 = vmatprep.subr.mxu0 0.0
    %57 = vmatpush1.msra.mxu0 %v37
    %58 = vmatprep.subr.mxu0 0.0
    %59 = vmatpush1.msra.mxu0 %v38
    %60 = vmatprep.subr.mxu0 0.0
    %61 = vmatpush1.msra.mxu0 %v39
    %62 = vmatprep.subr.mxu0 0.0
    %63 = vmatpush1.msra.mxu0 0.0
    %64 = vmatprep.subr.mxu0 0.0
    %65 = vmatpush1.msra.mxu0 0.0
    %66 = vmatprep.subr.mxu0 0.0
    %67 = vmatpush1.msra.mxu0 0.0
    %68 = vmatprep.subr.mxu0 0.0
    %69 = vmatpush1.msra.mxu0 0.0
    %70 = vmatprep.subr.mxu0 0.0
    %71 = vmatpush1.msra.mxu0 0.0
    %72 = vmatprep.subr.mxu0 0.0
    %73 = vmatpush1.msra.mxu0 0.0
    %74 = vmatprep.subr.mxu0 0.0
    %75 = vmatpush1.msra.mxu0 0.0
    %76 = vmatprep.subr.mxu0 0.0
    %77 = vmatpush1.msra.mxu0 0.0
    %78 = vmatprep.subr.mxu0 0.0
    %79 = vmatpush1.msra.mxu0 0.0
    %80 = vmatprep.subr.mxu0 0.0
    %81 = vmatpush1.msra.mxu0 0.0
    %82 = vmatprep.subr.mxu0 0.0
    %83 = vmatpush1.msra.mxu0 0.0
    %84 = vmatprep.subr.mxu0 0.0
    %85 = vmatpush1.msra.mxu0 0.0
    %86 = vmatprep.subr.mxu0 0.0
    %87 = vmatpush1.msra.mxu0 0.0
    %88 = vmatprep.subr.mxu0 0.0
    %89 = vmatpush1.msra.mxu0 0.0
    %90 = vmatprep.subr.mxu0 0.0
    %91 = vmatpush1.msra.mxu0 0.0
    %92 = vmatprep.subr.mxu0 0.0
    %93 = vmatpush1.msra.mxu0 0.0
    %94 = vmatprep.subr.mxu0 0.0
    %95 = vmatpush1.msra.mxu0 0.0
    %96 = vmatprep.subr.mxu0 0.0
    %97 = vmatpush1.msra.mxu0 0.0
    %98 = vmatprep.subr.mxu0 0.0
    %99 = vmatpush1.msra.mxu0 0.0
    %100 = vmatprep.subr.mxu0 0.0
    %101 = vmatpush1.msra.mxu0 0.0
    %102 = vmatprep.subr.mxu0 0.0
    %103 = vmatpush1.msra.mxu0 0.0
    %104 = vmatprep.subr.mxu0 0.0
    %105 = vmatpush1.msra.mxu0 0.0
    %106 = vmatprep.subr.mxu0 0.0
    %107 = vmatpush1.msra.mxu0 0.0
    %108 = vmatprep.subr.mxu0 0.0
    %109 = vmatpush1.msra.mxu0 0.0
    %110 = vmatprep.subr.mxu0 0.0
    %111 = vmatpush1.msra.mxu0 0.0
    %112 = vmatprep.subr.mxu0 0.0
    %113 = vmatpush1.msra.mxu0 0.0
    %114 = vmatprep.subr.mxu0 0.0
    %115 = vmatpush1.msra.mxu0 0.0
    %116 = vmatprep.subr.mxu0 0.0
    %117 = vmatpush1.msra.mxu0 0.0
    %118 = vmatprep.mubr.f32.mxu0 0.0
    %119 = vmatmul.mubr.f32.gmra.mrb[0].mxu0 %v49
    %v120 = vpop.f32.mrb[0].mxu0
    %v121 = vadd.f32 %v45, %v120
    %v122 = vpop.f32.mrb[0].mxu0
    %123 = vmatprep.mubr.f32.mxu0 0.0
    %124 = vmatmul.mubr.f32.gmra.mrb[0].mxu0 %v52
    %v125 = vpop.f32.mrb[0].mxu0
    %v126 = vadd.f32 %v45, %v125
    %v127 = vpop.f32.mrb[0].mxu0
    %128 = vdwg.mxu0
    %v129 = vmax.f32 %v121, 0.0
    %v130 = vmax.f32 %v126, 0.0
    %v131 = vld [vmem:[%s3] sm:$0xff]
    %v132 = vld [vmem:[%s3 + $0x8] sm:$0xff]
    %v133 = vld [vmem:[%s3 + $0x10] sm:$0xff]
    %v134 = vld [vmem:[%s3 + $0x18] sm:$0xff]
    %v135 = vld [vmem:[%s3 + $0x20] sm:$0xff]
    %v136 = vld [vmem:[%s3 + $0x28] sm:$0xff]
    %v137 = vld [vmem:[%s3 + $0x30] sm:$0xff]
    %v138 = vld [vmem:[%s3 + $0x38] sm:$0xff]
    %v139 = vld [vmem:[%s3 + $0x40] sm:$0xff]
    %v140 = vld [vmem:[%s3 + $0x48] sm:$0xff]
    %v141 = vld [vmem:[%s3 + $0x50] sm:$0xff]
    %v142 = vld [vmem:[%s3 + $0x58] sm:$0xff]
    %v143 = vld [vmem:[%s3 + $0x60] sm:$0xff]
    %v144 = vld [vmem:[%s3 + $0x68] sm:$0xff]
    %v145 = vld [vmem:[%s3 + $0x70] sm:$0xff]
    %v146 = vld [vmem:[%s3 + $0x78] sm:$0xff]
    %147 = vmatprep.subr.mxu0 0.0
    %148 = vmatpush1.msra.mxu0 %v131
    %149 = vmatprep.subr.mxu0 0.0
    %150 = vmatpush1.msra.mxu0 %v132
    %151 = vmatprep.subr.mxu0 0.0
    %152 = vmatpush1.msra.mxu0 %v133
    %153 = vmatprep.subr.mxu0 0.0
    %154 = vmatpush1.msra.mxu0 %v134
    %155 = vmatprep.subr.mxu0 0.0
    %156 = vmatpush1.msra.mxu0 %v135
    %157 = vmatprep.subr.mxu0 0.0
    %158 = vmatpush1.msra.mxu0 %v136
    %159 = vmatprep.subr.mxu0 0.0
    %160 = vmatpush1.msra.mxu0 %v137
    %161 = vmatprep.subr.mxu0 0.0
    %162 = vmatpush1.msra.mxu0 %v138
    %163 = vmatprep.subr.mxu0 0.0
    %164 = vmatpush1.msra.mxu0 %v139
    %165 = vmatprep.subr.mxu0 0.0
    %166 = vmatpush1.msra.mxu0 %v140
    %167 = vmatprep.subr.mxu0 0.0
    %168 = vmatpush1.msra.mxu0 %v141
    %169 = vmatprep.subr.mxu0 0.0
    %170 = vmatpush1.msra.mxu0 %v142
    %171 = vmatprep.subr.mxu0 0.0
    %172 = vmatpush1.msra.mxu0 %v143
    %173 = vmatprep.subr.mxu0 0.0
    %174 = vmatpush1.msra.mxu0 %v144
    %175 = vmatprep.subr.mxu0 0.0
    %176 = vmatpush1.msra.mxu0 %v145
    %177 = vmatprep.subr.mxu0 0.0
    %178 = vmatpush1.msra.mxu0 %v146
    %179 = vmatprep.subr.mxu0 0.0
    %180 = vmatpush1.msra.mxu0 0.0
    %181 = vmatprep.subr.mxu0 0.0
    %182 = vmatpush1.msra.mxu0 0.0
    %183 = vmatprep.subr.mxu0 0.0
    %184 = vmatpush1.msra.mxu0 0.0
    %185 = vmatprep.subr.mxu0 0.0
    %186 = vmatpush1.msra.mxu0 0.0
    %187 = vmatprep.subr.mxu0 0.0
    %188 = vmatpush1.msra.mxu0 0.0
    %189 = vmatprep.subr.mxu0 0.0
    %190 = vmatpush1.msra.mxu0 0.0
    %191 = vmatprep.subr.mxu0 0.0
    %192 = vmatpush1.msra.mxu0 0.0
    %193 = vmatprep.subr.mxu0 0.0
    %194 = vmatpush1.msra.mxu0 0.0
    %195 = vmatprep.subr.mxu0 0.0
    %196 = vmatpush1.msra.mxu0 0.0
    %197 = vmatprep.subr.mxu0 0.0
    %198 = vmatpush1.msra.mxu0 0.0
    %199 = vmatprep.subr.mxu0 0.0
    %200 = vmatpush1.msra.mxu0 0.0
    %201 = vmatprep.subr.mxu0 0.0
    %202 = vmatpush1.msra.mxu0 0.0
    %203 = vmatprep.subr.mxu0 0.0
    %204 = vmatpush1.msra.mxu0 0.0
    %205 = vmatprep.subr.mxu0 0.0
    %206 = vmatpush1.msra.mxu0 0.0
    %207 = vmatprep.subr.mxu0 0.0
    %208 = vmatpush1.msra.mxu0 0.0
    %209 = vmatprep.subr.mxu0 0.0
    %210 = vmatpush1.msra.mxu0 0.0
    %211 = vmatprep.mubr.f32.mxu0 0.0
    %212 = vmatmul.mubr.f32.gmra.mrb[0].mxu0 %v129
    %v213 = vpop.f32.mrb[0].mxu0
    %v214 = vadd.f32 0.0, %v213
    %v215 = vpop.f32.mrb[0].mxu0
    %216 = vmatprep.mubr.f32.mxu0 0.0
    %217 = vmatmul.mubr.f32.gmra.mrb[0].mxu0 %v130
    %v218 = vpop.f32.mrb[0].mxu0
    %v219 = vadd.f32 0.0, %v218
    %v220 = vpop.f32.mrb[0].mxu0
    %221 = vdwg.mxu0
    %p222 = scmp.lt.s32.totalorder 0, 0
    // Predicated region
    $region34: #{tpu_custom_call.1} parent=1 // pred_check
      %p223 = pneg %p222
    $region35: #{tpu_custom_call.1} parent=1 // pred_check_branch
      %225 = sbr.rel (%p223) target = $region37
    $region36: #{tpu_custom_call.1} parent=1 // pred_region
      %v226 = vld [vmem:[#allocation2] sm:$0xff]
      %v227 = vld [vmem:[#allocation2 + $0x8] sm:$0xff]
      %v228 = vadd.f32 %v226, %v214
      %v229 = vadd.f32 %v227, %v219
      %230 = vst.msk [vmem:[#allocation2] sm:$0xff] %vm47, %v228
      %231 = vst.msk [vmem:[#allocation2 + $0x8] sm:$0xff] %vm47, %v229
    $region37: #{tpu_custom_call.1} parent=1 // pred_fallthru
      _
    // Predicated region
    $region38: #{tpu_custom_call.1} parent=1 // pred_check
      %p232 = pneg %p27
    $region39: #{tpu_custom_call.1} parent=1 // pred_check_branch
      %234 = sbr.rel (%p232) target = $region41
    $region40: #{tpu_custom_call.1} parent=1 // pred_region
      %v235 = vld [vmem:[#allocation2] sm:$0xff]
      %v236 = vld [vmem:[#allocation2 + $0x8] sm:$0xff]
      %v237 = vadd.f32 %v235, %v214
      %v238 = vadd.f32 %v236, %v219
      %v239 = vld [vmem:[%s4] sm:$0x1]
      %v241 = vlaneseq
      %v242 = vshrl.u32 %v241, 7
      %v243 = vsub.s32 0, %v242
      %v244 = vrot.slane %v239, %v243
      %v246 = vadd.f32 %v237, %v244
      %v247 = vadd.f32 %v238, %v244
      %v248 = vld [vmem:[%s0] sm:$0xff]
      %v249 = vld [vmem:[%s0 + $0x8] sm:$0xff]
      %v250 = vadd.f32 %v246, %v248
      %v251 = vadd.f32 %v247, %v249
      %v252 = vsel %vm47, %v250, 0.0
      %253 = vadd.xlane.f32.xlu0 %v252
      %v254 = vpop.xlane.xlu0 %253
      %v255 = vsel %vm47, %v251, 0.0
      %256 = vadd.xlane.f32.xlu0 %v255
      %v257 = vpop.xlane.xlu0 %256
      %v258 = vrcp.pop 32.0
      %v259 = vmul.f32 %v254, %v258
      %v260 = vmul.f32 %v257, %v258
      %v261 = vsub.f32 %v250, %v259
      %v262 = vsub.f32 %v251, %v260
      %v263 = vmul.f32 %v261, %v261
      %v264 = vmul.f32 %v262, %v262
      %v265 = vsel %vm47, %v263, 0.0
      %266 = vadd.xlane.f32.xlu0 %v265
      %v267 = vpop.xlane.xlu0 %266
      %v268 = vsel %vm47, %v264, 0.0
      %269 = vadd.xlane.f32.xlu0 %v268
      %v270 = vpop.xlane.xlu0 %269
      %v271 = vmul.f32 %v267, %v258
      %v272 = vmul.f32 %v270, %v258
      %v273 = vadd.f32 %v271, 1e-05
      %v274 = vadd.f32 %v272, 1e-05
      %v275 = vrsqrt.pop %v273
      %v276 = vrsqrt.pop %v274
      %v277 = vmul.f32 %v261, %v275
      %v278 = vmul.f32 %v262, %v276
      %v279 = vld [vmem:[%s5] sm:$0x1]
      %v281 = vlaneseq
      %v282 = vshrl.u32 %v281, 7
      %v283 = vsub.s32 0, %v282
      %v284 = vrot.slane %v279, %v283
      %v286 = vmul.f32 %v277, %v284
      %v287 = vmul.f32 %v278, %v284
      %v288 = vld [vmem:[%s6] sm:$0x1]
      %v290 = vlaneseq
      %v291 = vshrl.u32 %v290, 7
      %v292 = vsub.s32 0, %v291
      %v293 = vrot.slane %v288, %v292
      %v295 = vadd.f32 %v286, %v293
      %v296 = vadd.f32 %v287, %v293
      %297 = vst.msk [vmem:[#allocation3] sm:$0xff] %vm47, %v295
      %298 = vst.msk [vmem:[#allocation3 + $0x8] sm:$0xff] %vm47, %v296
    $region41: #{tpu_custom_call.1} parent=1 // pred_fallthru
      _
    // Predicated region
    $region42: #{tpu_custom_call.1} parent=1 // pred_check
      _
    $region43: #{tpu_custom_call.1} parent=1 // pred_check_branch
      %300 = sbr.rel (0) target = $region45
    $region44: #{tpu_custom_call.1} parent=1 // pred_region
      %s302 = ssub.s32 256, 256
      %303 = vsyncadd [#allocation4], %s302
      %s304 = sshll.u32 [#allocation3], 4
      %s305 = int_to_ptr.vmem [resolvable:$true] %s304
      %310 = dma.vmem_to_hbm [thread:$0]  %s305, 256, %s7, [#allocation4], 128, 128, 8
    $region45: #{tpu_custom_call.1} parent=1 // pred_fallthru
      _
    // Predicated region
    $region46: #{tpu_custom_call.1} parent=1 // pred_check
      _
    $region47: #{tpu_custom_call.1} parent=1 // pred_check_branch
      %312 = sbr.rel (0) target = $region49
    $region48: #{tpu_custom_call.1} parent=1 // pred_region
      %313 = dma.done [#allocation4], 256
    $region49: #{tpu_custom_call.1} parent=1 // pred_fallthru
      _
    %314 = vsyncpa [#allocation4], 1

</llo_original>
